<compile_context>
chip_gen: v7x
topology: tpu7x:2x2x1
jax: 0.10.0
libtpu: 0.0.40
codegen_flags: <defaults>
</compile_context>

<pallas_src>
import functools

import jax
import jax.numpy as jnp
from jax import lax
from jax.experimental import pallas as pl
from jax.experimental.pallas import tpu as pltpu

EPS = 0.0001


def _round_up(x, m):
    return ((x + m - 1) // m) * m


def _dice_kernel(pred_ref, label_ref, out_ref, *, n_pix, tile_pix, needs_mask):
    """One (batch, pixel-tile) grid step.

    pred_ref : (C, tile_pix)   logits, native dtype, pixels on the lane axis
    label_ref: (1, tile_pix)   integer class ids
    out_ref  : (8, 128) f32    this tile's dice partial sum, broadcast into a
                               fully (8,128)-tiled lane-dense block.
    """
    logits = pred_ref[...].astype(jnp.float32)                # (C, T)

    # numerically-stable softmax over the class (sublane) axis
    m = jnp.max(logits, axis=0, keepdims=True)                # (1, T)
    e = jnp.exp(logits - m)                                   # (C, T) EUP
    s = jnp.sum(e, axis=0, keepdims=True)                     # (1, T)
    p = e * pl.reciprocal(s, approx=False)                    # (C, T)
    p = jnp.clip(p, EPS, 1.0 - EPS)

    lab = label_ref[...].astype(jnp.int32)                    # (1, T)
    class_iota = lax.broadcasted_iota(jnp.int32, p.shape, 0)  # (C, T)
    # intersection = p at the ground-truth class (one select, no one-hot array)
    inter = jnp.sum(jnp.where(class_iota == lab, p, 0.0),
                    axis=0, keepdims=True)                    # (1, T)
    sum_p = jnp.sum(p, axis=0, keepdims=True)                 # (1, T)

    # sum(one_hot) == 1.0 exactly for labels in [0, C)  (F.one_hot semantics)
    dice = 1.0 - (2.0 * inter + EPS) / (sum_p + 1.0 + EPS)    # (1, T)

    if needs_mask:
        # drop padded pixel columns of the (only partially valid) last tile
        pix = (pl.program_id(1) * tile_pix
               + lax.broadcasted_iota(jnp.int32, dice.shape, 1))
        dice = jnp.where(pix < n_pix, dice, 0.0)

    tile_sum = jnp.sum(dice, axis=1, keepdims=True)           # (1, 1)
    out_ref[...] = jnp.broadcast_to(tile_sum, out_ref.shape)  # (8, 128)


def dice_loss_pallas(pred_nchw, label_bhw, *, tile_pix=16384):
    """DiceLoss forward (logit_type='softmax').

    pred_nchw: float array [B, C, H, W] (f32 or bf16; streamed as-is)
    label_bhw: int   array [B, H, W] with values in [0, C)
    returns scalar float32 loss.
    """
    B, C, H, W = pred_nchw.shape
    P = H * W
    N = B * P

    # class-major, lane-dense layout: free (contiguous) reshapes of NCHW
    pred3d = pred_nchw.reshape(B, C, P)
    if label_bhw.dtype != jnp.int32:
        label_bhw = label_bhw.astype(jnp.int32)
    label3d = label_bhw.reshape(B, 1, P)

    # lane-aligned pixel tile; partial last tile handled in-kernel (no HBM pad)
    tile = _round_up(min(tile_pix, P), 128)
    num_tiles = pl.cdiv(P, tile)
    needs_mask = (num_tiles * tile) != P

    kernel = functools.partial(
        _dice_kernel, n_pix=P, tile_pix=tile, needs_mask=needs_mask)

    partial = pl.pallas_call(
        kernel,
        out_shape=jax.ShapeDtypeStruct((B, num_tiles, 8, 128), jnp.float32),
        grid_spec=pltpu.PrefetchScalarGridSpec(
            num_scalar_prefetch=0,
            grid=(B, num_tiles),
            in_specs=[
                pl.BlockSpec((None, C, tile), lambda b, j: (b, 0, j)),
                pl.BlockSpec((None, 1, tile), lambda b, j: (b, 0, j)),
            ],
            out_specs=pl.BlockSpec((None, None, 8, 128),
                                   lambda b, j: (b, j, 0, 0)),
        ),
        compiler_params=pltpu.CompilerParams(
            # every (batch, tile) writes its own block -> fully parallel grid
            dimension_semantics=("parallel", "parallel"),
        ),
    )(pred3d, label3d)

    # each (b, j, :, :) block holds that tile's dice partial sum (broadcast)
    return jnp.sum(partial[:, :, 0, 0]) / jnp.float32(N)


def dice_loss_ref(pred_nchw, label_bhw):
    """Pure-JAX reference mirroring the PyTorch module."""
    B, C, H, W = pred_nchw.shape
    pred = jnp.transpose(pred_nchw, (0, 2, 3, 1)).astype(jnp.float32)
    pred = jax.nn.softmax(pred, axis=-1)
    pred = jnp.clip(pred, EPS, 1.0 - EPS)
    pred = pred.reshape(-1, C)
    label = label_bhw.reshape(-1)
    onehot = jax.nn.one_hot(label, C, dtype=jnp.float32)
    inter = jnp.sum(pred * onehot, axis=1)
    dice = 1.0 - (2.0 * inter + EPS) / (
        jnp.sum(pred, axis=1) + jnp.sum(onehot, axis=1) + EPS)
    return jnp.mean(dice)


if __name__ == "__main__":
    key = jax.random.PRNGKey(0)
    k1, k2, k3, k4, k5, k6 = jax.random.split(key, 6)

    # main case (pixel count is lane-aligned; no masking path)
    B, C, H, W = 2, 4, 16, 16
    pred = jax.random.normal(k1, (B, C, H, W), dtype=jnp.float32)
    label = jax.random.randint(k2, (B, H, W), 0, C, dtype=jnp.int32)
    loss = jax.block_until_ready(dice_loss_pallas(pred, label))
    ref = jax.block_until_ready(dice_loss_ref(pred, label))
    assert jnp.allclose(loss, ref, atol=1e-5, rtol=1e-4), (loss, ref)

    # non-aligned spatial size: partial last tile masked in-kernel (no HBM pad)
    B2, C2, H2, W2 = 2, 4, 10, 10
    pred2 = jax.random.normal(k3, (B2, C2, H2, W2), dtype=jnp.float32)
    label2 = jax.random.randint(k4, (B2, H2, W2), 0, C2, dtype=jnp.int32)
    loss2 = jax.block_until_ready(dice_loss_pallas(pred2, label2))
    ref2 = jax.block_until_ready(dice_loss_ref(pred2, label2))
    assert jnp.allclose(loss2, ref2, atol=1e-5, rtol=1e-4), (loss2, ref2)

    # bf16 logits streamed natively through HBM, upcast to f32 in-kernel
    pred3 = jax.random.normal(k5, (B, C, H, W), dtype=jnp.bfloat16)
    label3 = jax.random.randint(k6, (B, H, W), 0, C, dtype=jnp.int32)
    loss3 = jax.block_until_ready(dice_loss_pallas(pred3, label3))
    ref3 = jax.block_until_ready(dice_loss_ref(pred3, label3))
    assert jnp.allclose(loss3, ref3, atol=1e-5, rtol=1e-4), (loss3, ref3)

    print("KERNEL_OK")
</pallas_src>

<mosaic_0001>
module attributes {stable_mosaic.version = 11 : i64} {
  func.func @_dice_kernel(%arg0: i32, %arg1: i32, %arg2: memref<1x4x256xf32, #tpu.memory_space<vmem>>, %arg3: memref<1x1x256xi32, #tpu.memory_space<vmem>>, %arg4: memref<1x1x8x128xf32, #tpu.memory_space<vmem>>) attributes {dimension_semantics = [#tpu.dimension_semantics<parallel>, #tpu.dimension_semantics<parallel>], iteration_bounds = array<i64: 2, 1>, scalar_prefetch = 0 : i64, scratch_operands = 0 : i64, tpu.core_type = #tpu.core_type<tc>, window_params = [{transform_indices = @transform_0, window_bounds = array<i64: 1, 4, 256>}, {transform_indices = @transform_1, window_bounds = array<i64: 1, 1, 256>}, {transform_indices = @transform_2, window_bounds = array<i64: 1, 1, 8, 128>}]} {
    %c0 = arith.constant 0 : index
    %c0_0 = arith.constant 0 : index
    %c0_1 = arith.constant 0 : index
    %0 = vector.load %arg2[%c0, %c0_0, %c0_1] : memref<1x4x256xf32, #tpu.memory_space<vmem>>, vector<1x4x256xf32>
    %1 = vector.shape_cast %0 : vector<1x4x256xf32> to vector<4x256xf32>
    %cst = arith.constant dense<0xFF800000> : vector<256xf32>
    %2 = vector.multi_reduction <maximumf>, %1, %cst [0] : vector<4x256xf32> to vector<256xf32>
    %3 = vector.shape_cast %2 : vector<256xf32> to vector<1x256xf32>
    %4 = vector.broadcast %3 : vector<1x256xf32> to vector<4x256xf32>
    %5 = arith.subf %1, %4 : vector<4x256xf32>
    %6 = math.exp %5 : vector<4x256xf32>
    %cst_2 = arith.constant dense<0.000000e+00> : vector<256xf32>
    %7 = vector.multi_reduction <add>, %6, %cst_2 [0] : vector<4x256xf32> to vector<256xf32>
    %8 = vector.shape_cast %7 : vector<256xf32> to vector<1x256xf32>
    %9 = tpu.reciprocal %8 : vector<1x256xf32> -> vector<1x256xf32>
    %10 = vector.broadcast %9 : vector<1x256xf32> to vector<4x256xf32>
    %11 = arith.mulf %6, %10 : vector<4x256xf32>
    %cst_3 = arith.constant 9.99999974E-5 : f32
    %cst_4 = arith.constant 0.999899983 : f32
    %12 = vector.broadcast %cst_3 : f32 to vector<4x256xf32>
    %13 = arith.maximumf %12, %11 : vector<4x256xf32>
    %14 = vector.broadcast %cst_4 : f32 to vector<4x256xf32>
    %15 = arith.minimumf %14, %13 : vector<4x256xf32>
    %c0_5 = arith.constant 0 : index
    %c0_6 = arith.constant 0 : index
    %c0_7 = arith.constant 0 : index
    %16 = vector.load %arg3[%c0_5, %c0_6, %c0_7] : memref<1x1x256xi32, #tpu.memory_space<vmem>>, vector<1x1x256xi32>
    %17 = vector.shape_cast %16 : vector<1x1x256xi32> to vector<1x256xi32>
    %18 = tpu.iota {dimensions = array<i32: 0>} : vector<4x256xi32>
    %19 = vector.broadcast %17 : vector<1x256xi32> to vector<4x256xi32>
    %20 = arith.cmpi eq, %18, %19 : vector<4x256xi32>
    %cst_8 = arith.constant 0.000000e+00 : f32
    %21 = vector.broadcast %cst_8 : f32 to vector<4x256xf32>
    %22 = arith.select %20, %15, %21 : vector<4x256xi1>, vector<4x256xf32>
    %cst_9 = arith.constant dense<0.000000e+00> : vector<256xf32>
    %23 = vector.multi_reduction <add>, %22, %cst_9 [0] : vector<4x256xf32> to vector<256xf32>
    %24 = vector.shape_cast %23 : vector<256xf32> to vector<1x256xf32>
    %cst_10 = arith.constant dense<0.000000e+00> : vector<256xf32>
    %25 = vector.multi_reduction <add>, %15, %cst_10 [0] : vector<4x256xf32> to vector<256xf32>
    %26 = vector.shape_cast %25 : vector<256xf32> to vector<1x256xf32>
    %cst_11 = arith.constant 2.000000e+00 : f32
    %27 = vector.broadcast %cst_11 : f32 to vector<1x256xf32>
    %28 = arith.mulf %27, %24 : vector<1x256xf32>
    %cst_12 = arith.constant 9.99999974E-5 : f32
    %29 = vector.broadcast %cst_12 : f32 to vector<1x256xf32>
    %30 = arith.addf %28, %29 : vector<1x256xf32>
    %cst_13 = arith.constant 1.000000e+00 : f32
    %31 = vector.broadcast %cst_13 : f32 to vector<1x256xf32>
    %32 = arith.addf %26, %31 : vector<1x256xf32>
    %cst_14 = arith.constant 9.99999974E-5 : f32
    %33 = vector.broadcast %cst_14 : f32 to vector<1x256xf32>
    %34 = arith.addf %32, %33 : vector<1x256xf32>
    %35 = arith.divf %30, %34 : vector<1x256xf32>
    %cst_15 = arith.constant 1.000000e+00 : f32
    %36 = vector.broadcast %cst_15 : f32 to vector<1x256xf32>
    %37 = arith.subf %36, %35 : vector<1x256xf32>
    %cst_16 = arith.constant dense<0.000000e+00> : vector<1xf32>
    %38 = vector.multi_reduction <add>, %37, %cst_16 [1] : vector<1x256xf32> to vector<1xf32>
    %39 = vector.shape_cast %38 : vector<1xf32> to vector<1x1xf32>
    %40 = vector.shape_cast %39 : vector<1x1xf32> to vector<1x1xf32>
    %41 = vector.broadcast %40 : vector<1x1xf32> to vector<8x128xf32>
    %c0_17 = arith.constant 0 : index
    %c0_18 = arith.constant 0 : index
    %c0_19 = arith.constant 0 : index
    %c0_20 = arith.constant 0 : index
    %42 = vector.load %arg4[%c0_17, %c0_18, %c0_19, %c0_20] : memref<1x1x8x128xf32, #tpu.memory_space<vmem>>, vector<1x1x8x128xf32>
    %43 = vector.shape_cast %42 : vector<1x1x8x128xf32> to vector<8x128xf32>
    %44 = vector.shape_cast %41 : vector<8x128xf32> to vector<1x1x8x128xf32>
    tpu.vector_store %arg4[%c0_17, %c0_18, %c0_19, %c0_20], %44 {strides = array<i32>} : memref<1x1x8x128xf32, #tpu.memory_space<vmem>>, vector<1x1x8x128xf32>,
    return
  }
  func.func @transform_0(%arg0: i32, %arg1: i32) -> (i32, i32, i32) {
    %c0_i32 = arith.constant 0 : i32
    %c0_i32_0 = arith.constant 0 : i32
    return %arg0, %c0_i32, %arg1 : i32, i32, i32
  }
  func.func @transform_1(%arg0: i32, %arg1: i32) -> (i32, i32, i32) {
    %c0_i32 = arith.constant 0 : i32
    %c0_i32_0 = arith.constant 0 : i32
    return %arg0, %c0_i32, %arg1 : i32, i32, i32
  }
  func.func @transform_2(%arg0: i32, %arg1: i32) -> (i32, i32, i32, i32) {
    %c0_i32 = arith.constant 0 : i32
    %c0_i32_0 = arith.constant 0 : i32
    %c0_i32_1 = arith.constant 0 : i32
    return %arg0, %arg1, %c0_i32, %c0_i32_0 : i32, i32, i32, i32
  }
}

</mosaic_0001>

<llo_original>
// kernel: tpu_custom_call.1
$region0: #{tpu_custom_call.1}
  #allocation0 [shape = 'u32[]', space=smem, size = 0x4, offset = 0x4, fixed_abs, tag = 'smem constant byte address 0x4 - core index']
  #allocation1 [shape = 'u32[144,128]{1,0:T(1,128)}', space=vmem, size = 0x12000, scoped, tag = 'internal scratch']
  %s0 = inlined_call_operand.hbm [shape: f32[2,4,256], index: 0, kind: input, shape index: {}]
  %s1 = inlined_call_operand.hbm [shape: s32[2,1,256], index: 1, kind: input, shape index: {}]
  %s2 = inlined_call_operand.hbm [shape: f32[2,1,8,128], index: 2, kind: output, shape index: {}]
  %s3 = sld [smem:[#allocation0]]
  $region49: #{tpu_custom_call.1} parent=0
    _
  %s5 = ssub.s32 1, %s3
  %s6 = scalar_select 0, %s5, %s3
  $region1: #{tpu_custom_call.1} parent=0
    #allocation2 [shape = 'u8[8192]{0}', space=vmem, size = 0x2000, scoped, tag = 'input window, operand 0']
    #allocation3 [shape = 's32[2]{0}', space=sflag, size = 0x8, scoped, tag = 'scoped memory for tpu_custom_call.1']
    #allocation4 [shape = 's32[2]{0}', space=sflag, size = 0x8, scoped, tag = 'scoped memory for tpu_custom_call.1']
    #allocation5 [shape = 'u8[2048]{0}', space=vmem, size = 0x800, scoped, tag = 'input window, operand 1']
    #allocation6 [shape = 's32[2]{0}', space=sflag, size = 0x8, scoped, tag = 'scoped memory for tpu_custom_call.1']
    #allocation7 [shape = 'u8[8192]{0}', space=vmem, size = 0x2000, scoped, tag = 'output window, operand 0']
    %7 = vsyncpa [#allocation3], 0
    %s8 = scalar_lea.sflag [#allocation3], 1
    %9 = vsyncpa %s8, 0
    %10 = vsyncpa [#allocation6], 0
    %s11 = scalar_lea.sflag [#allocation6], 1
    %12 = vsyncpa %s11, 0
    %13 = vsyncpa [#allocation4], 0
    %s14 = scalar_lea.sflag [#allocation4], 1
    %15 = vsyncpa %s14, 0
    loop: start=0, step=1, limit=4
    $region2: #{tpu_custom_call.1} parent=1 // loop_pre_header
      _
    $region3: #{tpu_custom_call.1} parent=1 // loop_header
      %s17 = sphi 0, %s21
      %p18 = scmp.ge.s32.totalorder %s17, 4
      %s24 = sphi 0, %s36
      %s25 = sphi 0, %s32
      %s26 = sphi 0, %s24
      %s27 = sphi 0, %s25
      %s28 = sphi 0, %s26
      %s29 = sphi 0, %s27
      %s41 = sphi 0, %s43
      %s44 = sphi 0, %s41
      %s45 = sphi 0, %s44
      %s61 = sphi 0, %s45
      %s69 = sphi 0, %s71
      %s72 = sphi 0, %s69
      %s73 = sphi 0, %s72
      %s89 = sphi 0, %s73
      %s97 = sphi 0, %s99
      %s100 = sphi 0, %s97
      %s101 = sphi 0, %s100
      %s117 = sphi 0, %s101
    $region4: #{tpu_custom_call.1} parent=1 // loop_header_branch
      %20 = sbr.rel (%p18) target = $region8
    $region5: #{tpu_custom_call.1} parent=1 // loop_body
      %s22 = ssub.s32 %s17, 1
      %s23 = ssub.s32 %s17, 2
      %s30 = sadd.s32 1, %s25
      %p31 = scmp.ge.s32.totalorder %s30, 1
      %s32 = scalar_select %p31, 0, %s30
      %s33 = sadd.s32 1, %s24
      %s34 = scalar_select %p31, %s33, %s24
      %p35 = scmp.ge.s32.totalorder %s34, 2
      %s36 = scalar_select %p35, 0, %s34
      %s37 = ssub.s32 %s24, %s36
      %s38 = ssub.s32 %s25, %s32
      %s39 = sor.u32 %s37, %s38
      %p40 = scmp.eq.s32.totalorder %s39, 0
      %s42 = sadd.s32 %s41, 1
      %s43 = scalar_select %p40, %s41, %s42
      %p46 = pneg %p40
      %p47 = scmp.eq.s32.totalorder %s17, 1
      %p48 = por %p46, %p47
      %p49 = scmp.ne.s32.totalorder %s41, %s44
      %p50 = scmp.eq.s32.totalorder %s17, 0
      %p51 = por %p49, %p50
      %p52 = scmp.ne.s32.totalorder %s41, %s44
      %p53 = scmp.eq.s32.totalorder %s22, 1
      %p54 = por %p52, %p53
      %p55 = scmp.ne.s32.totalorder %s44, %s45
      %p56 = scmp.eq.s32.totalorder %s22, 0
      %p57 = por %p55, %p56
      %p58 = scmp.ne.s32.totalorder %s44, %s45
      %p59 = scmp.eq.s32.totalorder %s23, 1
      %p60 = por %p58, %p59
      %p62 = scmp.ne.s32.totalorder %s45, %s61
      %p63 = scmp.eq.s32.totalorder %s23, 0
      %p64 = por %p62, %p63
      %s65 = ssub.s32 %s24, %s36
      %s66 = ssub.s32 %s25, %s32
      %s67 = sor.u32 %s65, %s66
      %p68 = scmp.eq.s32.totalorder %s67, 0
      %s70 = sadd.s32 %s69, 1
      %s71 = scalar_select %p68, %s69, %s70
      %p74 = pneg %p68
      %p75 = scmp.eq.s32.totalorder %s17, 1
      %p76 = por %p74, %p75
      %p77 = scmp.ne.s32.totalorder %s69, %s72
      %p78 = scmp.eq.s32.totalorder %s17, 0
      %p79 = por %p77, %p78
      %p80 = scmp.ne.s32.totalorder %s69, %s72
      %p81 = scmp.eq.s32.totalorder %s22, 1
      %p82 = por %p80, %p81
      %p83 = scmp.ne.s32.totalorder %s72, %s73
      %p84 = scmp.eq.s32.totalorder %s22, 0
      %p85 = por %p83, %p84
      %p86 = scmp.ne.s32.totalorder %s72, %s73
      %p87 = scmp.eq.s32.totalorder %s23, 1
      %p88 = por %p86, %p87
      %p90 = scmp.ne.s32.totalorder %s73, %s89
      %p91 = scmp.eq.s32.totalorder %s23, 0
      %p92 = por %p90, %p91
      %s93 = ssub.s32 %s24, %s36
      %s94 = ssub.s32 %s25, %s32
      %s95 = sor.u32 %s93, %s94
      %p96 = scmp.eq.s32.totalorder %s95, 0
      %s98 = sadd.s32 %s97, 1
      %s99 = scalar_select %p96, %s97, %s98
      %p102 = pneg %p96
      %p103 = scmp.eq.s32.totalorder %s17, 1
      %p104 = por %p102, %p103
      %p105 = scmp.ne.s32.totalorder %s97, %s100
      %p106 = scmp.eq.s32.totalorder %s17, 0
      %p107 = por %p105, %p106
      %p108 = scmp.ne.s32.totalorder %s97, %s100
      %p109 = scmp.eq.s32.totalorder %s22, 1
      %p110 = por %p108, %p109
      %p111 = scmp.ne.s32.totalorder %s100, %s101
      %p112 = scmp.eq.s32.totalorder %s22, 0
      %p113 = por %p111, %p112
      %p114 = scmp.ne.s32.totalorder %s100, %s101
      %p115 = scmp.eq.s32.totalorder %s23, 1
      %p116 = por %p114, %p115
      %p118 = scmp.ne.s32.totalorder %s101, %s117
      %p119 = scmp.eq.s32.totalorder %s23, 0
      %p120 = por %p118, %p119
      %p121 = scmp.le.s32.totalorder 1, %s17
      %p122 = scmp.lt.s32.totalorder %s17, 3
      %p123 = pnand %p121, %p122
      %p124 = pneg %p123
      // Predicated region
      $region9: #{tpu_custom_call.1} parent=5 // pred_check
        _
      $region10: #{tpu_custom_call.1} parent=5 // pred_check_branch
        %126 = sbr.rel (%p123) target = $region12
      $region11: #{tpu_custom_call.1} parent=5 // pred_region
        %s127 = ssub.s32 %s17, 1
      $region12: #{tpu_custom_call.1} parent=5 // pred_fallthru
        _
      %p128 = scmp.lt.s32.totalorder %s17, 2
      // Predicated region
      $region13: #{tpu_custom_call.1} parent=5 // pred_check
        %p129 = pneg %p128
      $region14: #{tpu_custom_call.1} parent=5 // pred_check_branch
        %131 = sbr.rel (%p129) target = $region16
      $region15: #{tpu_custom_call.1} parent=5 // pred_region
        // Predicated region
        $region17: #{tpu_custom_call.1} parent=15 // pred_check
          %p132 = pneg %p51
        $region18: #{tpu_custom_call.1} parent=15 // pred_check_branch
          %134 = sbr.rel (%p132) target = $region20
        $region19: #{tpu_custom_call.1} parent=15 // pred_region
          %s135 = sand.u32 %s41, 1
          %s136 = scalar_lea.sflag [#allocation3], %s135
          %s137 = sand.u32 %s41, 1
          %s138 = smul.addr %s137, 8
          %s139 = scalar_lea.vmem [#allocation2], %s138
          %s140 = smul.u32 2, %s25
          %s142 = ssub.s32 128, 128
          %143 = vsyncadd %s136, %s142
          %s144 = smul.addr %s24, 2
          %s145 = sadd.s32 %s140, %s144
          %s146 = smul.addr %s145, 64
          %s147 = scalar_lea.hbm %s0, %s146
          %s149 = sshll.u32 %s139, 4
          %s150 = int_to_ptr.vmem [resolvable:$true] %s149
          %152 = dma.hbm_to_vmem [thread:$0]  %s147, 128, %s150, %s136
        $region20: #{tpu_custom_call.1} parent=15 // pred_fallthru
          _
        // Predicated region
        $region21: #{tpu_custom_call.1} parent=15 // pred_check
          %p153 = pneg %p79
        $region22: #{tpu_custom_call.1} parent=15 // pred_check_branch
          %155 = sbr.rel (%p153) target = $region24
        $region23: #{tpu_custom_call.1} parent=15 // pred_region
          %s156 = sand.u32 %s69, 1
          %s157 = scalar_lea.sflag [#allocation6], %s156
          %s158 = sand.u32 %s69, 1
          %s159 = smul.addr %s158, 2
          %s160 = scalar_lea.vmem [#allocation5], %s159
          %s161 = smul.u32 2, %s25
          %s163 = ssub.s32 32, 32
          %164 = vsyncadd %s157, %s163
          %s165 = smul.addr %s24, 2
          %s166 = sadd.s32 %s161, %s165
          %s167 = smul.addr %s166, 16
          %s168 = scalar_lea.hbm %s1, %s167
          %s170 = sshll.u32 %s160, 4
          %s171 = int_to_ptr.vmem [resolvable:$true] %s170
          %173 = dma.hbm_to_vmem [thread:$0]  %s168, 32, %s171, %s157
        $region24: #{tpu_custom_call.1} parent=15 // pred_fallthru
          _
      $region16: #{tpu_custom_call.1} parent=5 // pred_fallthru
        _
      %p174 = scmp.le.s32.totalorder 1, %s17
      %p175 = scmp.lt.s32.totalorder %s17, 3
      %p176 = pnand %p174, %p175
      %p177 = pneg %p176
      // Predicated region
      $region25: #{tpu_custom_call.1} parent=5 // pred_check
        _
      $region26: #{tpu_custom_call.1} parent=5 // pred_check_branch
        %179 = sbr.rel (%p176) target = $region28
      $region27: #{tpu_custom_call.1} parent=5 // pred_region
        %s180 = ssub.s32 %s17, 1
        %s181 = sand.u32 %s44, 1
        %s182 = scalar_lea.sflag [#allocation3], %s181
        %s183 = sand.u32 %s44, 1
        %s184 = smul.addr %s183, 8
        %s185 = scalar_lea.vmem [#allocation2], %s184
        // Predicated region
        $region29: #{tpu_custom_call.1} parent=27 // pred_check
          %p186 = pneg %p57
        $region30: #{tpu_custom_call.1} parent=27 // pred_check_branch
          %188 = sbr.rel (%p186) target = $region32
        $region31: #{tpu_custom_call.1} parent=27 // pred_region
          %189 = dma.done %s182, 128
        $region32: #{tpu_custom_call.1} parent=27 // pred_fallthru
          _
        %s190 = sand.u32 %s72, 1
        %s191 = scalar_lea.sflag [#allocation6], %s190
        %s192 = sand.u32 %s72, 1
        %s193 = smul.addr %s192, 2
        %s194 = scalar_lea.vmem [#allocation5], %s193
        // Predicated region
        $region33: #{tpu_custom_call.1} parent=27 // pred_check
          %p195 = pneg %p85
        $region34: #{tpu_custom_call.1} parent=27 // pred_check_branch
          %197 = sbr.rel (%p195) target = $region36
        $region35: #{tpu_custom_call.1} parent=27 // pred_region
          %198 = dma.done %s191, 32
        $region36: #{tpu_custom_call.1} parent=27 // pred_fallthru
          _
        %s199 = sand.u32 %s44, 1
        %s200 = scalar_lea.sflag [#allocation3], %s199
        %s201 = sand.u32 %s44, 1
        %s202 = smul.addr %s201, 8
        %s203 = scalar_lea.vmem [#allocation2], %s202
        %p204 = pneg %p57
        %p205 = pneg %p54
        %s206 = sand.u32 %s72, 1
        %s207 = scalar_lea.sflag [#allocation6], %s206
        %s208 = sand.u32 %s72, 1
        %s209 = smul.addr %s208, 2
        %s210 = scalar_lea.vmem [#allocation5], %s209
        %p211 = pneg %p85
        %p212 = pneg %p82
        %p213 = pneg %p113
        %p214 = pneg %p110
        %s215 = sand.u32 %s100, 1
        %s216 = scalar_lea.sflag [#allocation4], %s215
        %s217 = sand.u32 %s100, 1
        %s218 = smul.addr %s217, 8
        %s219 = scalar_lea.vmem [#allocation7], %s218
        %s220 = smul.u32 2, %s27
        %s221 = smul.u32 2, %s27
        %v222 = vld [vmem:[%s185] sm:$0xff]
        %v224 = vcombine.high %v222, %v222
        %vm226 = vcmask 1043456
        %v227 = vsel %vm226, %v222, -inf
        %v228 = vrot.slane %v227, 4
        %v229 = vmax.f32 %v227, %v228
        %v230 = vrot.slane %v229, 2
        %v231 = vmax.f32 %v229, %v230
        %v232 = vrot.slane %v231, 1
        %v233 = vmax.f32 %v231, %v232
        %v234 = vsel %vm226, %v224, -inf
        %v235 = vrot.slane %v234, 4
        %v236 = vmax.f32 %v234, %v235
        %v237 = vrot.slane %v236, 2
        %v238 = vmax.f32 %v236, %v237
        %v239 = vrot.slane %v238, 1
        %v240 = vmax.f32 %v238, %v239
        %v243 = vcombine.low %v233, %v240
        %v245 = vsub.f32 %v222, %v243
        %v246 = vmul.f32 %v245, 1.442695
        %v247 = vpow.pop %v246
        %v249 = vcombine.high %v247, %v247
        %v251 = vsel %vm226, %v247, 0.0
        %v252 = vrot.slane %v251, 4
        %v253 = vadd.f32 %v251, %v252
        %v254 = vrot.slane %v253, 2
        %v255 = vadd.f32 %v253, %v254
        %v256 = vrot.slane %v255, 1
        %v257 = vadd.f32 %v255, %v256
        %v258 = vsel %vm226, %v249, 0.0
        %v259 = vrot.slane %v258, 4
        %v260 = vadd.f32 %v258, %v259
        %v261 = vrot.slane %v260, 2
        %v262 = vadd.f32 %v260, %v261
        %v263 = vrot.slane %v262, 1
        %v264 = vadd.f32 %v262, %v263
        %v265 = vrcp.pop %v257
        %v266 = vrcp.pop %v264
        %v269 = vcombine.low %v265, %v266
        %v271 = vmul.f32 %v247, %v269
        %v272 = vmax.f32 %v271, 0.0001
        %v273 = vmin.f32 %v272, 0.9999
        %v274 = vld [vmem:[%s194] sm:$0x3]
        %v275 = vlaneseq
        %v276 = vshrl.u32 %v275, 7
        %v277 = vlaneseq
        %v278 = vshrl.u32 %v277, 7
        %v279 = vsub.s32 0, %v278
        %v280 = vrot.slane %v274, %v279
        %v281 = vlaneseq
        %v282 = vshrl.u32 %v281, 7
        %v283 = vsub.s32 1, %v282
        %v284 = vrot.slane %v274, %v283
        %vm285 = vcmp.eq.s32.totalorder %v276, %v280
        %vm286 = vcmp.eq.s32.totalorder %v276, %v284
        %v288 = vcombine.high %v273, %v273
        %v290 = vsel %vm285, %v273, 0.0
        %v291 = vsel %vm286, %v288, 0.0
        %v292 = vsel %vm226, %v290, 0.0
        %v293 = vrot.slane %v292, 4
        %v294 = vadd.f32 %v292, %v293
        %v295 = vrot.slane %v294, 2
        %v296 = vadd.f32 %v294, %v295
        %v297 = vrot.slane %v296, 1
        %v298 = vadd.f32 %v296, %v297
        %v299 = vsel %vm226, %v291, 0.0
        %v300 = vrot.slane %v299, 4
        %v301 = vadd.f32 %v299, %v300
        %v302 = vrot.slane %v301, 2
        %v303 = vadd.f32 %v301, %v302
        %v304 = vrot.slane %v303, 1
        %v305 = vadd.f32 %v303, %v304
        %v306 = vsel %vm226, %v273, 0.0
        %v307 = vrot.slane %v306, 4
        %v308 = vadd.f32 %v306, %v307
        %v309 = vrot.slane %v308, 2
        %v310 = vadd.f32 %v308, %v309
        %v311 = vrot.slane %v310, 1
        %v312 = vadd.f32 %v310, %v311
        %v313 = vsel %vm226, %v288, 0.0
        %v314 = vrot.slane %v313, 4
        %v315 = vadd.f32 %v313, %v314
        %v316 = vrot.slane %v315, 2
        %v317 = vadd.f32 %v315, %v316
        %v318 = vrot.slane %v317, 1
        %v319 = vadd.f32 %v317, %v318
        %v320 = vmul.f32 %v298, 2.0
        %v321 = vmul.f32 %v305, 2.0
        %v322 = vadd.f32 %v320, 0.0001
        %v323 = vadd.f32 %v321, 0.0001
        %v324 = vadd.f32 %v312, 1.0
        %v325 = vadd.f32 %v319, 1.0
        %v326 = vadd.f32 %v324, 0.0001
        %v327 = vadd.f32 %v325, 0.0001
        %v328 = vrcp.pop %v326
        %v329 = vmul.f32 %v322, %v328
        %v330 = vrcp.pop %v327
        %v331 = vmul.f32 %v323, %v330
        %v332 = vsub.f32 1.0, %v329
        %v333 = vsub.f32 1.0, %v331
        %v334 = vadd.f32 %v332, %v333
        %335 = vadd.xlane.f32.xlu0 %v334
        %v336 = vpop.xlane.xlu0 %335
        %337 = vst [vmem:[%s219] sm:$0xff] %v336
        %s338 = sand.u32 %s100, 1
        %s339 = scalar_lea.sflag [#allocation4], %s338
        %s340 = sand.u32 %s100, 1
        %s341 = smul.addr %s340, 8
        %s342 = scalar_lea.vmem [#allocation7], %s341
        // Predicated region
        $region37: #{tpu_custom_call.1} parent=27 // pred_check
          %p343 = pneg %p110
        $region38: #{tpu_custom_call.1} parent=27 // pred_check_branch
          %345 = sbr.rel (%p343) target = $region40
        $region39: #{tpu_custom_call.1} parent=27 // pred_region
          %s347 = ssub.s32 128, 128
          %348 = vsyncadd %s339, %s347
          %s349 = sadd.s32 %s27, %s26
          %s350 = smul.addr %s349, 128
          %s351 = scalar_lea.hbm %s2, %s350
          %s353 = sshll.u32 %s342, 4
          %s354 = int_to_ptr.vmem [resolvable:$true] %s353
          %356 = dma.vmem_to_hbm [thread:$0]  %s354, 128, %s351, %s339
        $region40: #{tpu_custom_call.1} parent=27 // pred_fallthru
          _
      $region28: #{tpu_custom_call.1} parent=5 // pred_fallthru
        _
      %p357 = scmp.le.s32.totalorder 2, %s17
      // Predicated region
      $region41: #{tpu_custom_call.1} parent=5 // pred_check
        %p358 = pneg %p357
      $region42: #{tpu_custom_call.1} parent=5 // pred_check_branch
        %360 = sbr.rel (%p358) target = $region44
      $region43: #{tpu_custom_call.1} parent=5 // pred_region
        %s361 = ssub.s32 %s17, 2
        // Predicated region
        $region45: #{tpu_custom_call.1} parent=43 // pred_check
          %p362 = pneg %p116
        $region46: #{tpu_custom_call.1} parent=43 // pred_check_branch
          %364 = sbr.rel (%p362) target = $region48
        $region47: #{tpu_custom_call.1} parent=43 // pred_region
          %s365 = sand.u32 %s101, 1
          %s366 = scalar_lea.sflag [#allocation4], %s365
          %s367 = sand.u32 %s101, 1
          %s368 = smul.addr %s367, 8
          %s369 = scalar_lea.vmem [#allocation7], %s368
          %370 = dma.done %s366, 128
        $region48: #{tpu_custom_call.1} parent=43 // pred_fallthru
          _
      $region44: #{tpu_custom_call.1} parent=5 // pred_fallthru
        _
    $region6: #{tpu_custom_call.1} parent=1 // loop_footer
      %s21 = sadd.s32 1, %s17
    $region7: #{tpu_custom_call.1} parent=1 // loop_footer_branch
      %16 = sbr.rel target = $region3
    $region8: #{tpu_custom_call.1} parent=1 // loop_exit
      _
    %371 = vsyncpa [#allocation3], 1
    %s372 = scalar_lea.sflag [#allocation3], 1
    %373 = vsyncpa %s372, 1
    %374 = vsyncpa [#allocation6], 1
    %s375 = scalar_lea.sflag [#allocation6], 1
    %376 = vsyncpa %s375, 1
    %377 = vsyncpa [#allocation4], 1
    %s378 = scalar_lea.sflag [#allocation4], 1
    %379 = vsyncpa %s378, 1

</llo_original>
